<compile_context>
chip_gen: v6e
topology: v6e:2x2x1
jax: 0.10.0
libtpu: 0.0.40
codegen_flags: <defaults>
</compile_context>

<pallas_src>
import math

import jax
import jax.numpy as jnp
from jax.experimental import pallas as pl
from jax.experimental.pallas import tpu as pltpu


def _round_up(x, m):
    return (x + m - 1) // m * m


def _vmem_capacity_bytes():
    # Generation-aware VMEM capacity (v5e/v6e: 128 MiB, v7x: 64 MiB per TC).
    try:
        return int(pltpu.get_tpu_info().vmem_capacity_bytes)
    except Exception:
        return 64 * 1024 * 1024  # conservative default (v7x per-TC)


def _matmul_bias_kernel(x_ref, w_ref, b_ref, o_ref, acc_ref):
    """One (tm, tn) output tile; K reduced across grid axis 2 into acc_ref."""
    k = pl.program_id(2)

    @pl.when(k == 0)
    def _init():
        acc_ref[...] = jnp.zeros_like(acc_ref)

    # In-kernel cast of the streamed activation tile (avoids a separate
    # host-side astype pass over all of x -> halves activation HBM traffic).
    acc_ref[...] += jnp.dot(x_ref[...].astype(w_ref.dtype), w_ref[...],
                            preferred_element_type=jnp.float32)

    @pl.when(k == pl.num_programs(2) - 1)
    def _finalize():
        o_ref[...] = (acc_ref[...] + b_ref[...]).astype(o_ref.dtype)


def linear_pallas(x, w, b, *, tm=512, tn=512, tk=512,
                  compute_dtype=jnp.bfloat16, out_dtype=None):
    """y = x @ w + b with x:(M,K), w:(K,N), b:(N,). Tiled over M, N and K."""
    M, K = x.shape
    Kw, N = w.shape
    assert K == Kw, (K, Kw)
    out_dtype = out_dtype or x.dtype

    # Weights/bias are small and reusable: cast once on the host.
    wq = w.astype(compute_dtype)
    b2 = b.astype(jnp.float32).reshape(1, N)

    # ---- tile selection ----------------------------------------------------
    # M: ragged tail handled by masked output stores; keep a sublane multiple.
    tm = min(tm, _round_up(M, 8))
    grid_m = pl.cdiv(M, tm)
    # N: multiple of 128 for lane-dense stores, or the full N when small.
    if N <= tn:
        tn = N
    # v7x megacore: if there is only one M tile, split N so both TensorCores
    # get a parallel grid step.
    if grid_m == 1 and N >= 256 and pl.cdiv(N, tn) == 1:
        tn = _round_up(pl.cdiv(N, 2), 128)
    # K: only tile when the tile divides K exactly (ragged K would feed
    # garbage into the accumulator); otherwise reduce K in a single step.
    if K <= 1024:
        tk = K
    else:
        for cand in (512, 384, 256, 128):
            if K % cand == 0:
                tk = cand
                break
        else:
            tk = K
    grid = (grid_m, pl.cdiv(N, tn), pl.cdiv(K, tk))

    # ---- generation-aware VMEM budget ---------------------------------------
    xb = jnp.dtype(x.dtype).itemsize
    wb = jnp.dtype(compute_dtype).itemsize
    ob = jnp.dtype(out_dtype).itemsize
    footprint = (2 * tm * tk * xb      # double-buffered x tile
                 + 2 * tk * tn * wb    # double-buffered weight tile
                 + 2 * tm * tn * ob    # double-buffered output tile
                 + 2 * tn * 4          # bias row
                 + tm * tn * 4)        # f32 accumulator scratch
    cap = _vmem_capacity_bytes()
    vmem_limit = int(min(max(footprint + (4 << 20), 32 << 20), cap - (8 << 20)))

    return pl.pallas_call(
        _matmul_bias_kernel,
        out_shape=jax.ShapeDtypeStruct((M, N), out_dtype),
        grid_spec=pltpu.PrefetchScalarGridSpec(
            num_scalar_prefetch=0,
            grid=grid,
            in_specs=[
                pl.BlockSpec((tm, tk), lambda i, j, k: (i, k)),  # x row tile
                pl.BlockSpec((tk, tn), lambda i, j, k: (k, j)),  # weight tile
                pl.BlockSpec((1, tn), lambda i, j, k: (0, j)),   # bias row
            ],
            out_specs=pl.BlockSpec((tm, tn), lambda i, j, k: (i, j)),
            scratch_shapes=[pltpu.VMEM((tm, tn), jnp.float32)],
        ),
        compiler_params=pltpu.CompilerParams(
            dimension_semantics=("parallel", "parallel", "arbitrary"),
            vmem_limit_bytes=vmem_limit,
        ),
    )(x, wq, b2)


def _im2col(x, kernel_size, stride, padding):
    """[B, S, C] -> ([B, S_out, kernel_size*C], S_out) patches for Conv1d."""
    B, S, C = x.shape
    if padding:
        x = jnp.pad(x, ((0, 0), (padding, padding), (0, 0)))
    s_pad = S + 2 * padding
    s_out = (s_pad - kernel_size) // stride + 1
    if kernel_size == 1 and stride == 1:
        return x, s_out
    # TODO(synk): for kernel_size > 1 fuse this patch extraction into the
    # kernel as a sum of shifted matmuls (extra 'arbitrary' tap grid axis) so
    # patches never round-trip through HBM.
    cols = [x[:, k: k + (s_out - 1) * stride + 1: stride, :]
            for k in range(kernel_size)]
    patches = jnp.stack(cols, axis=2)               # [B, S_out, k, C]
    return patches.reshape(B, s_out, kernel_size * C), s_out


def conv1d_forward(x, weight, bias=None, *, stride=1, padding=0,
                   tm=512, compute_dtype=jnp.bfloat16, out_dtype=None):
    """Mirrors Conv1D.forward: x [B, S, in_dim] -> [B, S_out, out_dim].

    weight: [out_dim, in_dim, kernel_size] (PyTorch nn.Conv1d layout).
    bias:   [out_dim] or None.
    compute_dtype: MXU operand dtype (bf16 default; pass jnp.float32 for
    closer-to-f32 PyTorch parity).
    """
    B, S, c_in = x.shape
    c_out, c_in_w, ksize = weight.shape
    assert c_in == c_in_w, (c_in, c_in_w)
    if bias is None:
        bias = jnp.zeros((c_out,), jnp.float32)

    patches, s_out = _im2col(x, ksize, stride, padding)
    # w2[(k*in_dim + c), o] = weight[o, c, k]  -- matches patch flattening.
    w2 = jnp.transpose(weight, (2, 1, 0)).reshape(ksize * c_in, c_out)

    K = ksize * c_in
    if ksize > 1 and K % 128:
        # Lane-dense contraction: zero-pad K up to a multiple of 128 (zero
        # weight rows contribute nothing).  Only on the already-materialized
        # im2col path; the ksize==1 hot path reads x untouched.
        k_pad = _round_up(K, 128)
        patches = jnp.pad(patches, ((0, 0), (0, 0), (0, k_pad - K)))
        w2 = jnp.pad(w2, ((0, k_pad - K), (0, 0)))
        K = k_pad

    y = linear_pallas(patches.reshape(B * s_out, K), w2, bias,
                      tm=tm, compute_dtype=compute_dtype,
                      out_dtype=out_dtype or x.dtype)
    return y.reshape(B, s_out, c_out)


def _init_conv_params(key, in_dim, out_dim, kernel_size):
    kw, kb = jax.random.split(key)
    bound = 1.0 / math.sqrt(in_dim * kernel_size)   # nn.Conv1d default init
    w = jax.random.uniform(kw, (out_dim, in_dim, kernel_size), jnp.float32,
                           -bound, bound)
    b = jax.random.uniform(kb, (out_dim,), jnp.float32, -bound, bound)
    return w, b


def _conv_ref(x, w, b, stride, padding):
    y = jax.lax.conv_general_dilated(
        x, w, window_strides=(stride,), padding=[(padding, padding)],
        dimension_numbers=("NWC", "OIW", "NWC"),
        precision=jax.lax.Precision.HIGHEST)
    return y + b


if __name__ == "__main__":
    B, S, in_dim, out_dim = 2, 16, 32, 128
    key = jax.random.PRNGKey(0)
    kx, k1, k2 = jax.random.split(key, 3)

    x = jax.random.normal(kx, (B, S, in_dim), jnp.float32)

    # ---- config A: module defaults (kernel_size=1, stride=1, padding=0) ----
    w1, b1 = _init_conv_params(k1, in_dim, out_dim, 1)
    y_a = conv1d_forward(x, w1, b1)                                  # bf16 MXU
    y_a_f32 = conv1d_forward(x, w1, b1, compute_dtype=jnp.float32)   # f32 sanity

    ref_a = _conv_ref(x, w1, b1, 1, 0)

    # ---- config B: kernel_size=3, stride=2, padding=1 ----
    w2, b2 = _init_conv_params(k2, in_dim, out_dim, 3)
    y_b = conv1d_forward(x, w2, b2, stride=2, padding=1)
    ref_b = _conv_ref(x, w2, b2, 2, 1)

    jax.block_until_ready((y_a, y_a_f32, y_b))

    assert y_a.shape == (B, S, out_dim)
    assert y_b.shape == (B, (S + 2 * 1 - 3) // 2 + 1, out_dim)
    assert jnp.allclose(y_a_f32, ref_a, atol=1e-3, rtol=1e-3)   # exact plumbing
    assert jnp.allclose(y_a, ref_a, atol=2e-2, rtol=2e-2)       # bf16 operands
    assert jnp.allclose(y_b, ref_b, atol=2e-2, rtol=2e-2)
    print("KERNEL_OK")
</pallas_src>

<mosaic_0001>
module attributes {stable_mosaic.version = 11 : i64} {
  func.func @_matmul_bias_kernel(%arg0: i32, %arg1: i32, %arg2: i32, %arg3: memref<32x32xf32, #tpu.memory_space<vmem>>, %arg4: memref<32x128xbf16, #tpu.memory_space<vmem>>, %arg5: memref<1x128xf32, #tpu.memory_space<vmem>>, %arg6: memref<32x128xf32, #tpu.memory_space<vmem>>, %arg7: memref<32x128xf32, #tpu.memory_space<vmem>>) attributes {dimension_semantics = [#tpu.dimension_semantics<parallel>, #tpu.dimension_semantics<parallel>, #tpu.dimension_semantics<arbitrary>], iteration_bounds = array<i64: 1, 1, 1>, scalar_prefetch = 0 : i64, scratch_operands = 1 : i64, tpu.core_type = #tpu.core_type<tc>, window_params = [{transform_indices = @transform_0, window_bounds = array<i64: 32, 32>}, {transform_indices = @transform_1, window_bounds = array<i64: 32, 128>}, {transform_indices = @transform_2, window_bounds = array<i64: 1, 128>}, {transform_indices = @transform_3, window_bounds = array<i64: 32, 128>}]} {
    %c0_i32 = arith.constant 0 : i32
    %0 = arith.cmpi eq, %arg2, %c0_i32 : i32
    %1 = arith.extui %0 : i1 to i32
    %c0_i32_0 = arith.constant 0 : i32
    %2 = arith.cmpi ne, %1, %c0_i32_0 : i32
    scf.if %2 {
      %cst_10 = arith.constant 0.000000e+00 : f32
      %13 = vector.broadcast %cst_10 : f32 to vector<32x128xf32>
      %c0_11 = arith.constant 0 : index
      %c0_12 = arith.constant 0 : index
      %14 = vector.load %arg7[%c0_11, %c0_12] : memref<32x128xf32, #tpu.memory_space<vmem>>, vector<32x128xf32>
      tpu.vector_store %arg7[%c0_11, %c0_12], %13 {strides = array<i32>} : memref<32x128xf32, #tpu.memory_space<vmem>>, vector<32x128xf32>,
    } else {
    }
    %c0 = arith.constant 0 : index
    %c0_1 = arith.constant 0 : index
    %3 = vector.load %arg7[%c0, %c0_1] : memref<32x128xf32, #tpu.memory_space<vmem>>, vector<32x128xf32>
    %c0_2 = arith.constant 0 : index
    %c0_3 = arith.constant 0 : index
    %4 = vector.load %arg3[%c0_2, %c0_3] : memref<32x32xf32, #tpu.memory_space<vmem>>, vector<32x32xf32>
    %5 = arith.truncf %4 : vector<32x32xf32> to vector<32x32xbf16>
    %c0_4 = arith.constant 0 : index
    %c0_5 = arith.constant 0 : index
    %6 = vector.load %arg4[%c0_4, %c0_5] : memref<32x128xbf16, #tpu.memory_space<vmem>>, vector<32x128xbf16>
    %cst = arith.constant dense<0.000000e+00> : vector<32x128xf32>
    %7 = tpu.matmul %5, %6, %cst {dimension_numbers = #tpu.dot_dimension_numbers<[1], [0], [0], [1], [0, 0, 1, 1], [], []>} : vector<32x32xbf16>, vector<32x128xbf16>, vector<32x128xf32> -> vector<32x128xf32>
    %8 = arith.addf %3, %7 : vector<32x128xf32>
    %c0_6 = arith.constant 0 : index
    %c0_7 = arith.constant 0 : index
    %9 = vector.load %arg7[%c0_6, %c0_7] : memref<32x128xf32, #tpu.memory_space<vmem>>, vector<32x128xf32>
    tpu.vector_store %arg7[%c0_6, %c0_7], %8 {strides = array<i32>} : memref<32x128xf32, #tpu.memory_space<vmem>>, vector<32x128xf32>,
    %c0_i32_8 = arith.constant 0 : i32
    %10 = arith.cmpi eq, %arg2, %c0_i32_8 : i32
    %11 = arith.extui %10 : i1 to i32
    %c0_i32_9 = arith.constant 0 : i32
    %12 = arith.cmpi ne, %11, %c0_i32_9 : i32
    scf.if %12 {
      %c0_10 = arith.constant 0 : index
      %c0_11 = arith.constant 0 : index
      %13 = vector.load %arg7[%c0_10, %c0_11] : memref<32x128xf32, #tpu.memory_space<vmem>>, vector<32x128xf32>
      %c0_12 = arith.constant 0 : index
      %c0_13 = arith.constant 0 : index
      %14 = vector.load %arg5[%c0_12, %c0_13] : memref<1x128xf32, #tpu.memory_space<vmem>>, vector<1x128xf32>
      %15 = vector.broadcast %14 : vector<1x128xf32> to vector<32x128xf32>
      %16 = arith.addf %13, %15 : vector<32x128xf32>
      %c0_14 = arith.constant 0 : index
      %c0_15 = arith.constant 0 : index
      %17 = vector.load %arg6[%c0_14, %c0_15] : memref<32x128xf32, #tpu.memory_space<vmem>>, vector<32x128xf32>
      tpu.vector_store %arg6[%c0_14, %c0_15], %16 {strides = array<i32>} : memref<32x128xf32, #tpu.memory_space<vmem>>, vector<32x128xf32>,
    } else {
    }
    return
  }
  func.func @transform_0(%arg0: i32, %arg1: i32, %arg2: i32) -> (i32, i32) {
    %c0_i32 = arith.constant 0 : i32
    return %arg0, %arg2 : i32, i32
  }
  func.func @transform_1(%arg0: i32, %arg1: i32, %arg2: i32) -> (i32, i32) {
    %c0_i32 = arith.constant 0 : i32
    return %arg2, %arg1 : i32, i32
  }
  func.func @transform_2(%arg0: i32, %arg1: i32, %arg2: i32) -> (i32, i32) {
    %c0_i32 = arith.constant 0 : i32
    %c0_i32_0 = arith.constant 0 : i32
    return %c0_i32, %arg1 : i32, i32
  }
  func.func @transform_3(%arg0: i32, %arg1: i32, %arg2: i32) -> (i32, i32) {
    %c0_i32 = arith.constant 0 : i32
    return %arg0, %arg1 : i32, i32
  }
}

</mosaic_0001>

<llo_original>
// kernel: tpu_custom_call.1
$region0: #{tpu_custom_call.1}
  #allocation0 [shape = 'u32[]', space=smem, size = 0x4, offset = 0x4, fixed_abs, tag = 'smem constant byte address 0x4 - core index']
  #allocation1 [shape = 'u32[144,128]{1,0:T(1,128)}', space=vmem, size = 0x12000, scoped, tag = 'internal scratch']
  #allocation2 [shape = 'f32[32,128]{1,0:T(8,128)}', space=vmem, size = 0x4000, scoped, tag = 'scratch operand']
  %s0 = inlined_call_operand.hbm [shape: f32[32,32], index: 0, kind: input, shape index: {}]
  %s1 = inlined_call_operand.hbm [shape: bf16[32,128], index: 1, kind: input, shape index: {}]
  %s2 = inlined_call_operand.vmem [shape: f32[1,128], index: 2, kind: input, shape index: {}]
  %s3 = inlined_call_operand.hbm [shape: f32[32,128], index: 3, kind: output, shape index: {}]
  %s4 = sld [smem:[#allocation0]]
  $region38: #{tpu_custom_call.1} parent=0
    _
  %s6 = ssub.s32 1, %s4
  %s7 = scalar_select 0, %s6, %s4
  $region1: #{tpu_custom_call.1} parent=0
    #allocation3 [shape = 'u8[16384]{0}', space=vmem, size = 0x4000, scoped, tag = 'input window, operand 0, single buffered']
    #allocation4 [shape = 's32[1]{0}', space=sflag, size = 0x4, scoped, tag = 'scoped memory for tpu_custom_call.1']
    #allocation5 [shape = 's32[1]{0}', space=sflag, size = 0x4, scoped, tag = 'scoped memory for tpu_custom_call.1']
    #allocation6 [shape = 'u8[8192]{0}', space=vmem, size = 0x2000, scoped, tag = 'input window, operand 1, single buffered']
    #allocation7 [shape = 's32[1]{0}', space=sflag, size = 0x4, scoped, tag = 'scoped memory for tpu_custom_call.1']
    #allocation8 [shape = 'u8[16384]{0}', space=vmem, size = 0x4000, scoped, tag = 'output window, operand 0, single buffered']
    %8 = vsyncpa [#allocation4], 0
    %9 = vsyncpa [#allocation7], 0
    %10 = vsyncpa [#allocation5], 0
    // Predicated region
    $region2: #{tpu_custom_call.1} parent=1 // pred_check
      _
    $region3: #{tpu_custom_call.1} parent=1 // pred_check_branch
      %12 = sbr.rel (0) target = $region5
    $region4: #{tpu_custom_call.1} parent=1 // pred_region
      %s14 = ssub.s32 512, 512
      %15 = vsyncadd [#allocation4], %s14
      %s16 = sshll.u32 [#allocation3], 4
      %s17 = int_to_ptr.vmem [resolvable:$true] %s16
      %22 = dma.hbm_to_vmem [thread:$0]  %s0, 512, %s17, [#allocation4], 128, 128, 8
    $region5: #{tpu_custom_call.1} parent=1 // pred_fallthru
      _
    // Predicated region
    $region6: #{tpu_custom_call.1} parent=1 // pred_check
      _
    $region7: #{tpu_custom_call.1} parent=1 // pred_check_branch
      %24 = sbr.rel (0) target = $region9
    $region8: #{tpu_custom_call.1} parent=1 // pred_region
      %s26 = ssub.s32 256, 256
      %27 = vsyncadd [#allocation7], %s26
      %s28 = sshll.u32 [#allocation6], 4
      %s29 = int_to_ptr.vmem [resolvable:$true] %s28
      %34 = dma.hbm_to_vmem [thread:$0]  %s1, 256, %s29, [#allocation7], 64, 64, 4
    $region9: #{tpu_custom_call.1} parent=1 // pred_fallthru
      _
    // Predicated region
    $region10: #{tpu_custom_call.1} parent=1 // pred_check
      _
    $region11: #{tpu_custom_call.1} parent=1 // pred_check_branch
      %36 = sbr.rel (0) target = $region13
    $region12: #{tpu_custom_call.1} parent=1 // pred_region
      _
    $region13: #{tpu_custom_call.1} parent=1 // pred_fallthru
      _
    // Predicated region
    $region14: #{tpu_custom_call.1} parent=1 // pred_check
      _
    $region15: #{tpu_custom_call.1} parent=1 // pred_check_branch
      %38 = sbr.rel (0) target = $region17
    $region16: #{tpu_custom_call.1} parent=1 // pred_region
      %39 = dma.done [#allocation4], 512
    $region17: #{tpu_custom_call.1} parent=1 // pred_fallthru
      _
    // Predicated region
    $region18: #{tpu_custom_call.1} parent=1 // pred_check
      _
    $region19: #{tpu_custom_call.1} parent=1 // pred_check_branch
      %41 = sbr.rel (0) target = $region21
    $region20: #{tpu_custom_call.1} parent=1 // pred_region
      %42 = dma.done [#allocation7], 256
    $region21: #{tpu_custom_call.1} parent=1 // pred_fallthru
      _
    %p44 = scmp.eq.s32.totalorder 0, 0
    // Predicated region
    $region22: #{tpu_custom_call.1} parent=1 // pred_check
      %p45 = pneg %p44
    $region23: #{tpu_custom_call.1} parent=1 // pred_check_branch
      %47 = sbr.rel (%p45) target = $region25
    $region24: #{tpu_custom_call.1} parent=1 // pred_region
      %48 = vst [vmem:[#allocation2] sm:$0xff] 0.0
      %49 = vst [vmem:[#allocation2 + $0x8] sm:$0xff] 0.0
      %50 = vst [vmem:[#allocation2 + $0x10] sm:$0xff] 0.0
      %51 = vst [vmem:[#allocation2 + $0x18] sm:$0xff] 0.0
    $region25: #{tpu_custom_call.1} parent=1 // pred_fallthru
      _
    %v52 = vld [vmem:[#allocation2] sm:$0xff]
    %v53 = vld [vmem:[#allocation2 + $0x8] sm:$0xff]
    %v54 = vld [vmem:[#allocation2 + $0x10] sm:$0xff]
    %v55 = vld [vmem:[#allocation2 + $0x18] sm:$0xff]
    %v56 = vld [vmem:[#allocation3] sm:$0xff]
    %v57 = vld [vmem:[#allocation3 + $0x8] sm:$0xff]
    %v58 = vld [vmem:[#allocation3 + $0x10] sm:$0xff]
    %v59 = vld [vmem:[#allocation3 + $0x18] sm:$0xff]
    %v60 = vpack.c.bf16 %v57, %v56
    %v61 = vpack.c.bf16 %v59, %v58
    %v62 = vld [vmem:[#allocation6] sm:$0xf]
    %v63 = vld [vmem:[#allocation6 + $0x4] sm:$0xf]
    %v64 = vld [vmem:[#allocation6 + $0x8] sm:$0xf]
    %v65 = vld [vmem:[#allocation6 + $0xc] sm:$0xf]
    %v70 = vunpack.c.l.b16 %v62
    %v71 = vunpack.c.l.b16 %v63
    %v72 = vunpack.c.l.b16 %v64
    %v73 = vunpack.c.l.b16 %v65
    %v74 = vpack.c.b16 %v71, %v70
    %v75 = vpack.c.b16 %v73, %v72
    %vm78 = vcmask 261120
    %v80 = vsel %vm78, %v60, 0
    %v83 = vsel %vm78, %v61, 0
    %85 = vmatprep.subr.bf16.mxu0 0
    %86 = vmatpush1.bf16.msra.mxu0 0
    %87 = vmatprep.subr.bf16.mxu0 0
    %88 = vmatpush1.bf16.msra.mxu0 0
    %89 = vmatprep.subr.bf16.mxu0 0
    %90 = vmatpush1.bf16.msra.mxu0 0
    %91 = vmatprep.subr.bf16.mxu0 0
    %92 = vmatpush1.bf16.msra.mxu0 0
    %93 = vmatprep.subr.bf16.mxu0 0
    %94 = vmatpush1.bf16.msra.mxu0 0
    %95 = vmatprep.subr.bf16.mxu0 0
    %96 = vmatpush1.bf16.msra.mxu0 0
    %97 = vmatprep.subr.bf16.mxu0 0
    %98 = vmatpush1.bf16.msra.mxu0 %v75
    %99 = vmatprep.subr.bf16.mxu0 0
    %100 = vmatpush1.bf16.msra.mxu0 %v74
    %101 = vmatprep.subr.bf16.mxu0 0
    %102 = vmatpush2.bf16.msra.mxu0 0
    %103 = vmatprep.subr.bf16.mxu0 0
    %104 = vmatpush2.bf16.msra.mxu0 0
    %105 = vmatprep.subr.bf16.mxu0 0
    %106 = vmatpush2.bf16.msra.mxu0 0
    %107 = vmatprep.subr.bf16.mxu0 0
    %108 = vmatpush2.bf16.msra.mxu0 0
    %109 = vmatprep.subr.bf16.mxu0 0
    %110 = vmatpush2.bf16.msra.mxu0 0
    %111 = vmatprep.subr.bf16.mxu0 0
    %112 = vmatpush2.bf16.msra.mxu0 0
    %113 = vmatprep.subr.bf16.mxu0 0
    %114 = vmatpush2.bf16.msra.mxu0 0
    %115 = vmatprep.subr.bf16.mxu0 0
    %116 = vmatpush2.bf16.msra.mxu0 0
    %117 = vmatprep.mubr.bf16.mxu0 0
    %118 = vmatmul.mubr.bf16.gmra.mxu0 %v80
    %v119 = vpop.f32.mrf.mxu0
    %v120 = vadd.f32 0.0, %v119
    %v121 = vpop.f32.mrf.mxu0
    %v122 = vpop.f32.mrf.mxu0
    %v123 = vadd.f32 0.0, %v122
    %v124 = vpop.f32.mrf.mxu0
    %125 = vmatprep.mubr.bf16.mxu0 0
    %126 = vmatmul.mubr.bf16.gmra.mxu0 %v83
    %v127 = vpop.f32.mrf.mxu0
    %v128 = vadd.f32 0.0, %v127
    %v129 = vpop.f32.mrf.mxu0
    %v130 = vpop.f32.mrf.mxu0
    %v131 = vadd.f32 0.0, %v130
    %v132 = vpop.f32.mrf.mxu0
    %133 = vdwg.mxu0
    %v134 = vadd.f32 %v52, %v120
    %v135 = vadd.f32 %v53, %v123
    %v136 = vadd.f32 %v54, %v128
    %v137 = vadd.f32 %v55, %v131
    %138 = vst [vmem:[#allocation2] sm:$0xff] %v134
    %139 = vst [vmem:[#allocation2 + $0x8] sm:$0xff] %v135
    %140 = vst [vmem:[#allocation2 + $0x10] sm:$0xff] %v136
    %141 = vst [vmem:[#allocation2 + $0x18] sm:$0xff] %v137
    // Predicated region
    $region26: #{tpu_custom_call.1} parent=1 // pred_check
      %p142 = pneg %p44
    $region27: #{tpu_custom_call.1} parent=1 // pred_check_branch
      %144 = sbr.rel (%p142) target = $region29
    $region28: #{tpu_custom_call.1} parent=1 // pred_region
      %v145 = vld [vmem:[#allocation2] sm:$0xff]
      %v146 = vld [vmem:[#allocation2 + $0x8] sm:$0xff]
      %v147 = vld [vmem:[#allocation2 + $0x10] sm:$0xff]
      %v148 = vld [vmem:[#allocation2 + $0x18] sm:$0xff]
      %v149 = vld [vmem:[%s2] sm:$0x1]
      %v151 = vlaneseq
      %v152 = vshrl.u32 %v151, 7
      %v153 = vsub.s32 0, %v152
      %v154 = vrot.slane %v149, %v153
      %v156 = vadd.f32 %v145, %v154
      %v157 = vadd.f32 %v146, %v154
      %v158 = vadd.f32 %v147, %v154
      %v159 = vadd.f32 %v148, %v154
      %160 = vst [vmem:[#allocation8] sm:$0xff] %v156
      %161 = vst [vmem:[#allocation8 + $0x8] sm:$0xff] %v157
      %162 = vst [vmem:[#allocation8 + $0x10] sm:$0xff] %v158
      %163 = vst [vmem:[#allocation8 + $0x18] sm:$0xff] %v159
    $region29: #{tpu_custom_call.1} parent=1 // pred_fallthru
      _
    // Predicated region
    $region30: #{tpu_custom_call.1} parent=1 // pred_check
      _
    $region31: #{tpu_custom_call.1} parent=1 // pred_check_branch
      %165 = sbr.rel (0) target = $region33
    $region32: #{tpu_custom_call.1} parent=1 // pred_region
      %s167 = ssub.s32 512, 512
      %168 = vsyncadd [#allocation5], %s167
      %s169 = sshll.u32 [#allocation8], 4
      %s170 = int_to_ptr.vmem [resolvable:$true] %s169
      %175 = dma.vmem_to_hbm [thread:$0]  %s170, 512, %s3, [#allocation5], 128, 128, 8
    $region33: #{tpu_custom_call.1} parent=1 // pred_fallthru
      _
    // Predicated region
    $region34: #{tpu_custom_call.1} parent=1 // pred_check
      _
    $region35: #{tpu_custom_call.1} parent=1 // pred_check_branch
      %177 = sbr.rel (0) target = $region37
    $region36: #{tpu_custom_call.1} parent=1 // pred_region
      %178 = dma.done [#allocation5], 512
    $region37: #{tpu_custom_call.1} parent=1 // pred_fallthru
      _
    %179 = vsyncpa [#allocation4], 1
    %180 = vsyncpa [#allocation7], 1
    %181 = vsyncpa [#allocation5], 1

</llo_original>
